<compile_context>
chip_gen: v5e
topology: v5e:2x2
jax: 0.10.0
libtpu: 0.0.40
codegen_flags: <defaults>
</compile_context>

<pallas_src>
import functools

import jax
import jax.numpy as jnp
from jax.experimental import pallas as pl
from jax.experimental.pallas import tpu as pltpu


def _channel_se_kernel(x_ref, w1t_ref, w2t_ref, fold_ref, foldt_ref, o_ref, *, inv_ch):
    """Fused pool -> MLP -> sigmoid -> rescale on a lane-dense (bt, C, H*W) block.

    x_ref    : (bt, C, H*W) f32      input block (last dim lane-dense)
    w1t_ref  : (W, Hid)     f32      transposed Linear-1 weight (resident)
    w2t_ref  : (Hid, W)     f32      transposed Linear-2 weight (resident)
    fold_ref : (H*W, W)     f32      fold[h*W + w, w] = 1   (resident)
    foldt_ref: (W, H*W)     f32      fold.T                 (resident)
    o_ref    : (bt, C, H*W) f32      output block
    """
    x = x_ref[...]                                           # (bt, C, HW)

    # Squeeze: sum over C (sublane-ish axis), then fold the H groups of the
    # flattened H*W lane axis down to per-w sums with a small matmul.
    col_sum = jnp.sum(x, axis=1)                             # (bt, HW)
    pooled = jnp.dot(col_sum, fold_ref[...],
                     preferred_element_type=jnp.float32) * inv_ch   # (bt, W)

    # Excitation: Linear(W->Hid, no bias) -> ReLU -> Linear(Hid->W) -> Sigmoid.
    hidden = jnp.maximum(
        jnp.dot(pooled, w1t_ref[...], preferred_element_type=jnp.float32), 0.0)
    logits = jnp.dot(hidden, w2t_ref[...], preferred_element_type=jnp.float32)
    scale = jax.nn.sigmoid(logits)                           # (bt, W)

    # Expand scale (bt, W) -> (bt, H*W) (repeat every W lanes) via fold.T,
    # then rescale the lane-dense block.
    scale_hw = jnp.dot(scale, foldt_ref[...],
                       preferred_element_type=jnp.float32)   # (bt, HW)
    o_ref[...] = x * scale_hw[:, None, :]


def channel_se_layer(x, w1, w2, *, block_budget_bytes=4 << 20):
    """Pallas wrapper.

    x : (B, C, H, W) float32
    w1: (Hid, W)     float32  -- PyTorch Linear(W -> Hid).weight  (Hid = W//red + 1)
    w2: (W, Hid)     float32  -- PyTorch Linear(Hid -> W).weight
    """
    x = jnp.asarray(x, jnp.float32)
    B, C, H, W = x.shape
    HW = H * W

    w1t = jnp.asarray(w1, jnp.float32).T        # (W, Hid)
    w2t = jnp.asarray(w2, jnp.float32).T        # (Hid, W)
    hid = w1t.shape[1]

    # fold[h*W + w, w] = 1 : maps the folded H*W lane axis <-> the W "SE channels".
    fold = jnp.tile(jnp.eye(W, dtype=jnp.float32), (H, 1))   # (HW, W)
    foldt = jnp.transpose(fold)                              # (W, HW)

    # Free contiguous reshape in HBM: last dim becomes H*W (lane-dense).
    x_flat = x.reshape(B, C, HW)

    # Pick how many batch elements to process per grid step (largest divisor
    # of B whose block fits the per-step budget; at least 1).
    elem_bytes = C * HW * 4
    bt = 1
    for cand in range(1, B + 1):
        if B % cand == 0 and cand * elem_bytes <= block_budget_bytes:
            bt = cand
    grid = (B // bt,)

    # VMEM: double-buffered input + output blocks + resident small constants.
    const_bytes = 4 * (fold.size + foldt.size + w1t.size + w2t.size)
    vmem_limit = 4 * bt * elem_bytes + int(const_bytes) + (2 << 20)
    vmem_limit = int(min(max(vmem_limit, 16 << 20), 64 << 20))

    kernel = functools.partial(_channel_se_kernel, inv_ch=1.0 / (C * H))

    out_flat = pl.pallas_call(
        kernel,
        out_shape=jax.ShapeDtypeStruct((B, C, HW), jnp.float32),
        grid=grid,
        in_specs=[
            pl.BlockSpec((bt, C, HW), lambda b: (b, 0, 0)),   # streamed x
            pl.BlockSpec((W, hid), lambda b: (0, 0)),         # resident weights
            pl.BlockSpec((hid, W), lambda b: (0, 0)),
            pl.BlockSpec((HW, W), lambda b: (0, 0)),          # resident fold
            pl.BlockSpec((W, HW), lambda b: (0, 0)),          # resident fold.T
        ],
        out_specs=pl.BlockSpec((bt, C, HW), lambda b: (b, 0, 0)),
        compiler_params=pltpu.CompilerParams(
            dimension_semantics=("parallel",),
            vmem_limit_bytes=vmem_limit,
        ),
    )(x_flat, w1t, w2t, fold, foldt)

    return out_flat.reshape(B, C, H, W)


def _reference(x, w1, w2):
    """Pure-JAX reference mirroring the PyTorch module exactly."""
    xp = jnp.transpose(x, (0, 3, 2, 1))                  # (B, W, H, C)
    y = jnp.mean(xp, axis=(2, 3))                        # (B, W)
    y = jnp.maximum(y @ w1.T, 0.0)
    y = jax.nn.sigmoid(y @ w2.T)
    xp = xp * y[:, :, None, None]
    return jnp.transpose(xp, (0, 3, 2, 1))               # (B, C, H, W)


if __name__ == "__main__":
    # Small shapes consistent with the module: x is NCHW; the SE "channel"
    # dimension after the permutes is W (channel_size = W = 16, reduction = 16
    # -> hidden = int(16 // 16) + 1 = 2, matching nn.Linear(channel, channel//red + 1)).
    B, C, H, W = 2, 4, 16, 16
    reduction = 16
    hidden = int(W // reduction) + 1   # = 2

    key = jax.random.PRNGKey(0)
    kx, k1, k2 = jax.random.split(key, 3)

    x = jax.random.normal(kx, (B, C, H, W), dtype=jnp.float32)
    # nn.Linear weight shapes: (out_features, in_features).
    w1 = jax.random.normal(k1, (hidden, W), dtype=jnp.float32) * 0.1   # Linear(W -> hidden)
    w2 = jax.random.normal(k2, (W, hidden), dtype=jnp.float32) * 0.1   # Linear(hidden -> W)

    out = jax.block_until_ready(channel_se_layer(x, w1, w2))
    ref = jax.block_until_ready(_reference(x, w1, w2))

    assert out.shape == (B, C, H, W)
    assert jnp.allclose(out, ref, atol=2e-5, rtol=2e-5), "mismatch vs reference"

    print("KERNEL_OK")
</pallas_src>

<mosaic_0001>
module attributes {stable_mosaic.version = 11 : i64} {
  func.func @_channel_se_kernel(%arg0: i32, %arg1: memref<2x4x256xf32, #tpu.memory_space<vmem>>, %arg2: memref<16x2xf32, #tpu.memory_space<vmem>>, %arg3: memref<2x16xf32, #tpu.memory_space<vmem>>, %arg4: memref<256x16xf32, #tpu.memory_space<vmem>>, %arg5: memref<16x256xf32, #tpu.memory_space<vmem>>, %arg6: memref<2x4x256xf32, #tpu.memory_space<vmem>>) attributes {dimension_semantics = [#tpu.dimension_semantics<parallel>], iteration_bounds = array<i64: 1>, scalar_prefetch = 0 : i64, scratch_operands = 0 : i64, tpu.core_type = #tpu.core_type<tc>, window_params = [{transform_indices = @transform_0, window_bounds = array<i64: 2, 4, 256>}, {pipeline_mode = #tpu.pipeline_mode<synchronous>, transform_indices = @transform_1, window_bounds = array<i64: 16, 2>}, {pipeline_mode = #tpu.pipeline_mode<synchronous>, transform_indices = @transform_2, window_bounds = array<i64: 2, 16>}, {pipeline_mode = #tpu.pipeline_mode<synchronous>, transform_indices = @transform_3, window_bounds = array<i64: 256, 16>}, {pipeline_mode = #tpu.pipeline_mode<synchronous>, transform_indices = @transform_4, window_bounds = array<i64: 16, 256>}, {transform_indices = @transform_5, window_bounds = array<i64: 2, 4, 256>}]} {
    %c0 = arith.constant 0 : index
    %c0_0 = arith.constant 0 : index
    %c0_1 = arith.constant 0 : index
    %0 = vector.load %arg1[%c0, %c0_0, %c0_1] : memref<2x4x256xf32, #tpu.memory_space<vmem>>, vector<2x4x256xf32>
    %cst = arith.constant dense<0.000000e+00> : vector<2x256xf32>
    %1 = vector.multi_reduction <add>, %0, %cst [1] : vector<2x4x256xf32> to vector<2x256xf32>
    %c0_2 = arith.constant 0 : index
    %c0_3 = arith.constant 0 : index
    %2 = vector.load %arg4[%c0_2, %c0_3] : memref<256x16xf32, #tpu.memory_space<vmem>>, vector<256x16xf32>
    %cst_4 = arith.constant dense<0.000000e+00> : vector<2x16xf32>
    %3 = tpu.matmul %1, %2, %cst_4 {dimension_numbers = #tpu.dot_dimension_numbers<[1], [0], [0], [1], [0, 0, 1, 1], [], []>} : vector<2x256xf32>, vector<256x16xf32>, vector<2x16xf32> -> vector<2x16xf32>
    %cst_5 = arith.constant 1.562500e-02 : f32
    %4 = vector.broadcast %cst_5 : f32 to vector<2x16xf32>
    %5 = arith.mulf %3, %4 : vector<2x16xf32>
    %c0_6 = arith.constant 0 : index
    %c0_7 = arith.constant 0 : index
    %6 = vector.load %arg2[%c0_6, %c0_7] : memref<16x2xf32, #tpu.memory_space<vmem>>, vector<16x2xf32>
    %cst_8 = arith.constant dense<0.000000e+00> : vector<2x2xf32>
    %7 = tpu.matmul %5, %6, %cst_8 {dimension_numbers = #tpu.dot_dimension_numbers<[1], [0], [0], [1], [0, 0, 1, 1], [], []>} : vector<2x16xf32>, vector<16x2xf32>, vector<2x2xf32> -> vector<2x2xf32>
    %cst_9 = arith.constant 0.000000e+00 : f32
    %8 = vector.broadcast %cst_9 : f32 to vector<2x2xf32>
    %9 = arith.maximumf %7, %8 : vector<2x2xf32>
    %c0_10 = arith.constant 0 : index
    %c0_11 = arith.constant 0 : index
    %10 = vector.load %arg3[%c0_10, %c0_11] : memref<2x16xf32, #tpu.memory_space<vmem>>, vector<2x16xf32>
    %cst_12 = arith.constant dense<0.000000e+00> : vector<2x16xf32>
    %11 = tpu.matmul %9, %10, %cst_12 {dimension_numbers = #tpu.dot_dimension_numbers<[1], [0], [0], [1], [0, 0, 1, 1], [], []>} : vector<2x2xf32>, vector<2x16xf32>, vector<2x16xf32> -> vector<2x16xf32>
    %12 = arith.negf %11 : vector<2x16xf32>
    %13 = math.exp %12 : vector<2x16xf32>
    %cst_13 = arith.constant 1.000000e+00 : f32
    %14 = vector.broadcast %cst_13 : f32 to vector<2x16xf32>
    %15 = arith.addf %14, %13 : vector<2x16xf32>
    %16 = arith.divf %14, %15 : vector<2x16xf32>
    %c0_14 = arith.constant 0 : index
    %c0_15 = arith.constant 0 : index
    %17 = vector.load %arg5[%c0_14, %c0_15] : memref<16x256xf32, #tpu.memory_space<vmem>>, vector<16x256xf32>
    %cst_16 = arith.constant dense<0.000000e+00> : vector<2x256xf32>
    %18 = tpu.matmul %16, %17, %cst_16 {dimension_numbers = #tpu.dot_dimension_numbers<[1], [0], [0], [1], [0, 0, 1, 1], [], []>} : vector<2x16xf32>, vector<16x256xf32>, vector<2x256xf32> -> vector<2x256xf32>
    %19 = vector.shape_cast %18 : vector<2x256xf32> to vector<2x1x256xf32>
    %20 = vector.broadcast %19 : vector<2x1x256xf32> to vector<2x4x256xf32>
    %21 = arith.mulf %0, %20 : vector<2x4x256xf32>
    %c0_17 = arith.constant 0 : index
    %c0_18 = arith.constant 0 : index
    %c0_19 = arith.constant 0 : index
    %22 = vector.load %arg6[%c0_17, %c0_18, %c0_19] : memref<2x4x256xf32, #tpu.memory_space<vmem>>, vector<2x4x256xf32>
    tpu.vector_store %arg6[%c0_17, %c0_18, %c0_19], %21 {strides = array<i32>} : memref<2x4x256xf32, #tpu.memory_space<vmem>>, vector<2x4x256xf32>,
    return
  }
  func.func @transform_0(%arg0: i32) -> (i32, i32, i32) {
    %c0_i32 = arith.constant 0 : i32
    %c0_i32_0 = arith.constant 0 : i32
    %c0_i32_1 = arith.constant 0 : i32
    return %arg0, %c0_i32, %c0_i32_0 : i32, i32, i32
  }
  func.func @transform_1(%arg0: i32) -> (i32, i32) {
    %c0_i32 = arith.constant 0 : i32
    %c0_i32_0 = arith.constant 0 : i32
    %c0_i32_1 = arith.constant 0 : i32
    return %c0_i32, %c0_i32_0 : i32, i32
  }
  func.func @transform_2(%arg0: i32) -> (i32, i32) {
    %c0_i32 = arith.constant 0 : i32
    %c0_i32_0 = arith.constant 0 : i32
    %c0_i32_1 = arith.constant 0 : i32
    return %c0_i32, %c0_i32_0 : i32, i32
  }
  func.func @transform_3(%arg0: i32) -> (i32, i32) {
    %c0_i32 = arith.constant 0 : i32
    %c0_i32_0 = arith.constant 0 : i32
    %c0_i32_1 = arith.constant 0 : i32
    return %c0_i32, %c0_i32_0 : i32, i32
  }
  func.func @transform_4(%arg0: i32) -> (i32, i32) {
    %c0_i32 = arith.constant 0 : i32
    %c0_i32_0 = arith.constant 0 : i32
    %c0_i32_1 = arith.constant 0 : i32
    return %c0_i32, %c0_i32_0 : i32, i32
  }
  func.func @transform_5(%arg0: i32) -> (i32, i32, i32) {
    %c0_i32 = arith.constant 0 : i32
    %c0_i32_0 = arith.constant 0 : i32
    %c0_i32_1 = arith.constant 0 : i32
    return %arg0, %c0_i32, %c0_i32_0 : i32, i32, i32
  }
}

</mosaic_0001>

<llo_original>
// kernel: tpu_custom_call.1
$region0: #{tpu_custom_call.1}
  #allocation0 [shape = 'u32[]', space=smem, size = 0x4, offset = 0x4, fixed_abs, tag = 'smem constant byte address 0x4 - core index']
  #allocation1 [shape = 'u32[72,128]{1,0:T(1,128)}', space=vmem, size = 0x9000, scoped, tag = 'internal scratch']
  %s0 = inlined_call_operand.vmem [shape: f32[2,4,256], index: 0, kind: input, shape index: {}]
  %s1 = inlined_call_operand.vmem [shape: f32[16,2], index: 1, kind: input, shape index: {}]
  %s2 = inlined_call_operand.vmem [shape: f32[2,16], index: 2, kind: input, shape index: {}]
  %s3 = inlined_call_operand.vmem [shape: f32[256,16], index: 3, kind: input, shape index: {}]
  %s4 = inlined_call_operand.vmem [shape: f32[16,256], index: 4, kind: input, shape index: {}]
  %s5 = inlined_call_operand.hbm [shape: f32[2,4,256], index: 5, kind: output, shape index: {}]
  %s6 = sld [smem:[#allocation0]]
  $region30: #{tpu_custom_call.1} parent=0
    _
  %s8 = ssub.s32 1, %s6
  %s9 = scalar_select 0, %s8, %s6
  $region1: #{tpu_custom_call.1} parent=0
    #allocation2 [shape = 'u8[8192]{0}', space=vmem, size = 0x2000, scoped, tag = 'output window, operand 0, single buffered']
    #allocation3 [shape = 's32[1]{0}', space=sflag, size = 0x4, scoped, tag = 'scoped memory for tpu_custom_call.1']
    %10 = vsyncpa [#allocation3], 0
    // Predicated region
    $region2: #{tpu_custom_call.1} parent=1 // pred_check
      _
    $region3: #{tpu_custom_call.1} parent=1 // pred_check_branch
      %12 = sbr.rel (0) target = $region5
    $region4: #{tpu_custom_call.1} parent=1 // pred_region
      _
    $region5: #{tpu_custom_call.1} parent=1 // pred_fallthru
      _
    // Predicated region
    $region6: #{tpu_custom_call.1} parent=1 // pred_check
      _
    $region7: #{tpu_custom_call.1} parent=1 // pred_check_branch
      %14 = sbr.rel (0) target = $region9
    $region8: #{tpu_custom_call.1} parent=1 // pred_region
      _
    $region9: #{tpu_custom_call.1} parent=1 // pred_fallthru
      _
    // Predicated region
    $region10: #{tpu_custom_call.1} parent=1 // pred_check
      _
    $region11: #{tpu_custom_call.1} parent=1 // pred_check_branch
      %16 = sbr.rel (0) target = $region13
    $region12: #{tpu_custom_call.1} parent=1 // pred_region
      _
    $region13: #{tpu_custom_call.1} parent=1 // pred_fallthru
      _
    // Predicated region
    $region14: #{tpu_custom_call.1} parent=1 // pred_check
      _
    $region15: #{tpu_custom_call.1} parent=1 // pred_check_branch
      %18 = sbr.rel (0) target = $region17
    $region16: #{tpu_custom_call.1} parent=1 // pred_region
      _
    $region17: #{tpu_custom_call.1} parent=1 // pred_fallthru
      _
    // Predicated region
    $region18: #{tpu_custom_call.1} parent=1 // pred_check
      _
    $region19: #{tpu_custom_call.1} parent=1 // pred_check_branch
      %20 = sbr.rel (0) target = $region21
    $region20: #{tpu_custom_call.1} parent=1 // pred_region
      _
    $region21: #{tpu_custom_call.1} parent=1 // pred_fallthru
      _
    %v21 = vld [vmem:[%s0] sm:$0xff]
    %v22 = vld [vmem:[%s0 + $0x8] sm:$0xff]
    %25 = vst [vmem:[#allocation1] ss:$2 sm:$0xff] %v21
    %v26 = vld.sshfl [vmem:[#allocation1] sm:$0xff pattern:$0x75316420]
    %v27 = vld.sshfl [vmem:[#allocation1 + $0x8] sm:$0xff pattern:$0x75316420]
    %s28 = scalar_lea.vmem [#allocation1], 16
    %29 = vst [vmem:[%s28] ss:$2 sm:$0xff] %v22
    %v30 = vld.sshfl [vmem:[#allocation1 + $0x10] sm:$0xff pattern:$0x75316420]
    %v31 = vld.sshfl [vmem:[#allocation1 + $0x18] sm:$0xff pattern:$0x75316420]
    %vm36 = vcmask 1043456
    %v37 = vsel %vm36, %v26, 0.0
    %v38 = vrot.slane %v37, 4
    %v39 = vadd.f32 %v37, %v38
    %v40 = vrot.slane %v39, 2
    %v41 = vadd.f32 %v39, %v40
    %v42 = vrot.slane %v41, 1
    %v43 = vadd.f32 %v41, %v42
    %v44 = vsel %vm36, %v27, 0.0
    %v45 = vrot.slane %v44, 4
    %v46 = vadd.f32 %v44, %v45
    %v47 = vrot.slane %v46, 2
    %v48 = vadd.f32 %v46, %v47
    %v49 = vrot.slane %v48, 1
    %v50 = vadd.f32 %v48, %v49
    %v51 = vsel %vm36, %v30, 0.0
    %v52 = vrot.slane %v51, 4
    %v53 = vadd.f32 %v51, %v52
    %v54 = vrot.slane %v53, 2
    %v55 = vadd.f32 %v53, %v54
    %v56 = vrot.slane %v55, 1
    %v57 = vadd.f32 %v55, %v56
    %v58 = vsel %vm36, %v31, 0.0
    %v59 = vrot.slane %v58, 4
    %v60 = vadd.f32 %v58, %v59
    %v61 = vrot.slane %v60, 2
    %v62 = vadd.f32 %v60, %v61
    %v63 = vrot.slane %v62, 1
    %v64 = vadd.f32 %v62, %v63
    %v65 = vld [vmem:[%s3] sm:$0xff]
    %v66 = vld [vmem:[%s3 + $0x8] sm:$0xff]
    %v67 = vld [vmem:[%s3 + $0x10] sm:$0xff]
    %v68 = vld [vmem:[%s3 + $0x18] sm:$0xff]
    %v69 = vld [vmem:[%s3 + $0x20] sm:$0xff]
    %v70 = vld [vmem:[%s3 + $0x28] sm:$0xff]
    %v71 = vld [vmem:[%s3 + $0x30] sm:$0xff]
    %v72 = vld [vmem:[%s3 + $0x38] sm:$0xff]
    %v73 = vld [vmem:[%s3 + $0x40] sm:$0xff]
    %v74 = vld [vmem:[%s3 + $0x48] sm:$0xff]
    %v75 = vld [vmem:[%s3 + $0x50] sm:$0xff]
    %v76 = vld [vmem:[%s3 + $0x58] sm:$0xff]
    %v77 = vld [vmem:[%s3 + $0x60] sm:$0xff]
    %v78 = vld [vmem:[%s3 + $0x68] sm:$0xff]
    %v79 = vld [vmem:[%s3 + $0x70] sm:$0xff]
    %v80 = vld [vmem:[%s3 + $0x78] sm:$0xff]
    %v81 = vld [vmem:[%s3 + $0x80] sm:$0xff]
    %v82 = vld [vmem:[%s3 + $0x88] sm:$0xff]
    %v83 = vld [vmem:[%s3 + $0x90] sm:$0xff]
    %v84 = vld [vmem:[%s3 + $0x98] sm:$0xff]
    %v85 = vld [vmem:[%s3 + $0xa0] sm:$0xff]
    %v86 = vld [vmem:[%s3 + $0xa8] sm:$0xff]
    %v87 = vld [vmem:[%s3 + $0xb0] sm:$0xff]
    %v88 = vld [vmem:[%s3 + $0xb8] sm:$0xff]
    %v89 = vld [vmem:[%s3 + $0xc0] sm:$0xff]
    %v90 = vld [vmem:[%s3 + $0xc8] sm:$0xff]
    %v91 = vld [vmem:[%s3 + $0xd0] sm:$0xff]
    %v92 = vld [vmem:[%s3 + $0xd8] sm:$0xff]
    %v93 = vld [vmem:[%s3 + $0xe0] sm:$0xff]
    %v94 = vld [vmem:[%s3 + $0xe8] sm:$0xff]
    %v95 = vld [vmem:[%s3 + $0xf0] sm:$0xff]
    %v96 = vld [vmem:[%s3 + $0xf8] sm:$0xff]
    %vm101 = vcmask 1041409
    %v102 = vsel %vm101, %v57, %v43
    %v103 = vsel %vm101, %v64, %v50
    %106 = vmatpush.msra.mxu0 %v80
    %107 = vmatpush.msra.mxu0 %v79
    %108 = vmatpush.msra.mxu0 %v78
    %109 = vmatpush.msra.mxu0 %v77
    %110 = vmatpush.msra.mxu0 %v76
    %111 = vmatpush.msra.mxu0 %v75
    %112 = vmatpush.msra.mxu0 %v74
    %113 = vmatpush.msra.mxu0 %v73
    %114 = vmatpush.msra.mxu0 %v72
    %115 = vmatpush.msra.mxu0 %v71
    %116 = vmatpush.msra.mxu0 %v70
    %117 = vmatpush.msra.mxu0 %v69
    %118 = vmatpush.msra.mxu0 %v68
    %119 = vmatpush.msra.mxu0 %v67
    %120 = vmatpush.msra.mxu0 %v66
    %121 = vmatpush.msra.mxu0 %v65
    %122 = vmatmul.f32.gmra.mxu0 %v102
    %v123 = vpop.f32.mrf.mxu0
    %v124 = vadd.f32 0.0, %v123
    %125 = vdwg.mxu0
    %126 = vmatpush.msra.mxu0 %v96
    %127 = vmatpush.msra.mxu0 %v95
    %128 = vmatpush.msra.mxu0 %v94
    %129 = vmatpush.msra.mxu0 %v93
    %130 = vmatpush.msra.mxu0 %v92
    %131 = vmatpush.msra.mxu0 %v91
    %132 = vmatpush.msra.mxu0 %v90
    %133 = vmatpush.msra.mxu0 %v89
    %134 = vmatpush.msra.mxu0 %v88
    %135 = vmatpush.msra.mxu0 %v87
    %136 = vmatpush.msra.mxu0 %v86
    %137 = vmatpush.msra.mxu0 %v85
    %138 = vmatpush.msra.mxu0 %v84
    %139 = vmatpush.msra.mxu0 %v83
    %140 = vmatpush.msra.mxu0 %v82
    %141 = vmatpush.msra.mxu0 %v81
    %142 = vmatmul.f32.gmra.mxu0 %v103
    %v143 = vpop.f32.mrf.mxu0
    %v144 = vadd.f32 %v124, %v143
    %145 = vdwg.mxu0
    %v146 = vmul.f32 %v144, 0.015625
    %v147 = vld [vmem:[%s1] sm:$0xff]
    %v148 = vld [vmem:[%s1 + $0x8] sm:$0xff]
    %vm149 = vcmask 130048
    %v151 = vsel %vm149, %v146, 0
    %153 = vmatpush.msra.mxu0 0.0
    %154 = vmatpush.msra.mxu0 0.0
    %155 = vmatpush.msra.mxu0 0.0
    %156 = vmatpush.msra.mxu0 0.0
    %157 = vmatpush.msra.mxu0 0.0
    %158 = vmatpush.msra.mxu0 0.0
    %159 = vmatpush.msra.mxu0 0.0
    %160 = vmatpush.msra.mxu0 0.0
    %161 = vmatpush.msra.mxu0 0.0
    %162 = vmatpush.msra.mxu0 0.0
    %163 = vmatpush.msra.mxu0 0.0
    %164 = vmatpush.msra.mxu0 0.0
    %165 = vmatpush.msra.mxu0 0.0
    %166 = vmatpush.msra.mxu0 0.0
    %167 = vmatpush.msra.mxu0 %v148
    %168 = vmatpush.msra.mxu0 %v147
    %169 = vmatmul.f32.gmra.mxu0 %v151
    %v170 = vpop.f32.mrf.mxu0
    %v171 = vadd.f32 0.0, %v170
    %172 = vdwg.mxu0
    %v173 = vmax.f32 %v171, 0.0
    %v174 = vld [vmem:[%s2] sm:$0x3]
    %vm175 = vcmask 15360
    %v177 = vsel %vm175, %v173, 0
    %vm179 = vcmask 1041408
    %v181 = vsel %vm179, %v174, 0
    %183 = vmatpush.msra.mxu0 0.0
    %184 = vmatpush.msra.mxu0 0.0
    %185 = vmatpush.msra.mxu0 0.0
    %186 = vmatpush.msra.mxu0 0.0
    %187 = vmatpush.msra.mxu0 0.0
    %188 = vmatpush.msra.mxu0 0.0
    %189 = vmatpush.msra.mxu0 0.0
    %190 = vmatpush.msra.mxu0 0.0
    %191 = vmatpush.msra.mxu0 0.0
    %192 = vmatpush.msra.mxu0 0.0
    %193 = vmatpush.msra.mxu0 0.0
    %194 = vmatpush.msra.mxu0 0.0
    %195 = vmatpush.msra.mxu0 0.0
    %196 = vmatpush.msra.mxu0 0.0
    %197 = vmatpush.msra.mxu0 0.0
    %198 = vmatpush.msra.mxu0 %v181
    %199 = vmatmul.f32.gmra.mxu0 %v177
    %v200 = vpop.f32.mrf.mxu0
    %v201 = vadd.f32 0.0, %v200
    %202 = vdwg.mxu0
    %v203 = vxor.u32 %v201, 2147483648
    %v204 = vmul.f32 %v203, 1.442695
    %v205 = vpow.pop %v204
    %v206 = vadd.f32 %v205, 1.0
    %v207 = vrcp.pop %v206
    %v208 = vmul.f32 %v206, %v207
    %v209 = vsub.f32 1.0, %v208
    %v210 = vmul.f32 %v207, %v209
    %v211 = vadd.f32 %v207, %v210
    %vm212 = vweird.f32 %v206
    %vm213 = vweird.f32 %v207
    %vm214 = vmor %vm212, %vm213
    %v215 = vsel %vm214, %v207, %v211
    %v216 = vand.u32 2147483647, %v206
    %vm217 = vcmp.eq.f32.partialorder %v216, 8.507059e+37
    %v218 = vand.u32 %v206, 2147483648
    %v219 = vor.u32 1.1754944e-38, %v218
    %v220 = vsel %vm217, %v219, %v215
    %v221 = vmul.f32 1.0, %v220
    %v222 = vld [vmem:[%s4] sm:$0xff]
    %v223 = vld [vmem:[%s4 + $0x8] sm:$0xff]
    %v224 = vld [vmem:[%s4 + $0x10] sm:$0xff]
    %v225 = vld [vmem:[%s4 + $0x18] sm:$0xff]
    %v227 = vsel %vm149, %v221, 0
    %229 = vmatpush.msra.mxu0 0.0
    %230 = vmatpush.msra.mxu0 0.0
    %231 = vmatpush.msra.mxu0 0.0
    %232 = vmatpush.msra.mxu0 0.0
    %233 = vmatpush.msra.mxu0 0.0
    %234 = vmatpush.msra.mxu0 0.0
    %235 = vmatpush.msra.mxu0 0.0
    %236 = vmatpush.msra.mxu0 0.0
    %237 = vmatpush.msra.mxu0 0.0
    %238 = vmatpush.msra.mxu0 0.0
    %239 = vmatpush.msra.mxu0 0.0
    %240 = vmatpush.msra.mxu0 0.0
    %241 = vmatpush.msra.mxu0 0.0
    %242 = vmatpush.msra.mxu0 0.0
    %243 = vmatpush.msra.mxu0 %v224
    %244 = vmatpush.msra.mxu0 %v222
    %245 = vmatmul.f32.gmra.mxu0 %v227
    %v246 = vpop.f32.mrf.mxu0
    %v247 = vadd.f32 0.0, %v246
    %248 = vdwg.mxu0
    %249 = vmatpush.msra.mxu0 0.0
    %250 = vmatpush.msra.mxu0 0.0
    %251 = vmatpush.msra.mxu0 0.0
    %252 = vmatpush.msra.mxu0 0.0
    %253 = vmatpush.msra.mxu0 0.0
    %254 = vmatpush.msra.mxu0 0.0
    %255 = vmatpush.msra.mxu0 0.0
    %256 = vmatpush.msra.mxu0 0.0
    %257 = vmatpush.msra.mxu0 0.0
    %258 = vmatpush.msra.mxu0 0.0
    %259 = vmatpush.msra.mxu0 0.0
    %260 = vmatpush.msra.mxu0 0.0
    %261 = vmatpush.msra.mxu0 0.0
    %262 = vmatpush.msra.mxu0 0.0
    %263 = vmatpush.msra.mxu0 %v225
    %264 = vmatpush.msra.mxu0 %v223
    %265 = vmatmul.f32.gmra.mxu0 %v227
    %v266 = vpop.f32.mrf.mxu0
    %v267 = vadd.f32 0.0, %v266
    %268 = vdwg.mxu0
    %v271 = vrot.slane %v267, 7
    %vm272 = vcmask 1040384
    %v273 = vsel %vm272, %v247, %v271
    %v274 = vsel %vm101, %v247, %v271
    %v275 = vrot.slane %v274, 1
    %v276 = vperm.slane %v273, 0
    %v277 = vperm.slane %v273, 1
    %v278 = vperm.slane %v275, 0
    %v279 = vperm.slane %v275, 1
    %v280 = vrot.slane %v277, 4
    %v281 = vrot.slane %v279, 4
    %v282 = vsel %vm36, %v276, %v280
    %v283 = vsel %vm36, %v278, %v281
    %v286 = vmul.f32 %v21, %v282
    %v287 = vmul.f32 %v22, %v283
    %288 = vst [vmem:[#allocation2] sm:$0xff] %v286
    %289 = vst [vmem:[#allocation2 + $0x8] sm:$0xff] %v287
    // Predicated region
    $region22: #{tpu_custom_call.1} parent=1 // pred_check
      _
    $region23: #{tpu_custom_call.1} parent=1 // pred_check_branch
      %291 = sbr.rel (0) target = $region25
    $region24: #{tpu_custom_call.1} parent=1 // pred_region
      %293 = vsyncadd [#allocation3], 0
      %s294 = sshll.u32 [#allocation2], 4
      %s295 = int_to_ptr.vmem [resolvable:$true] %s294
      %s296 = sshll.u32 %s5, 4
      %s297 = int_to_ptr.hbm [resolvable:$true] %s296
      %302 = dma.vmem_to_hbm [thread:$0]  %s295, 256, %s297, [#allocation3], 128, 128, 8
    $region25: #{tpu_custom_call.1} parent=1 // pred_fallthru
      _
    // Predicated region
    $region26: #{tpu_custom_call.1} parent=1 // pred_check
      _
    $region27: #{tpu_custom_call.1} parent=1 // pred_check_branch
      %304 = sbr.rel (0) target = $region29
    $region28: #{tpu_custom_call.1} parent=1 // pred_region
      %306 = dma.done [#allocation3], 256
    $region29: #{tpu_custom_call.1} parent=1 // pred_fallthru
      _
    %307 = vsyncpa [#allocation3], 1

</llo_original>
